<compile_context>
chip_gen: v7x
topology: tpu7x:2x2x1
jax: 0.10.0
libtpu: 0.0.40
codegen_flags: <defaults>
</compile_context>

<pallas_src>
import jax
import jax.numpy as jnp
from jax.experimental import pallas as pl
from jax.experimental.pallas import tpu as pltpu

EPS = 1e-5


def _round_up(a, b):
    return ((a + b - 1) // b) * b


def _vmem_capacity_bytes(default=64 * 1024 * 1024):
    """Generation-aware VMEM capacity (v5e/v6e: 128 MiB, v7x: 64 MiB per TC).

    Falls back to the v7x-safe 64 MiB so a v6e-tuned working set can never
    OOM / spill on a v7x part if the query is unavailable.
    """
    try:
        info = pltpu.get_tpu_info()
        cap = getattr(info, "vmem_capacity_bytes", None)
        if cap:
            return int(cap)
    except Exception:
        pass
    return default


# ---------------------------------------------------------------------------
# Kernels
# ---------------------------------------------------------------------------
def _make_fused_streaming_kernel(n_true, eps, num_tiles):
    """Fused single-HBM-read path.

    Streams x tile-by-tile (BlockSpec pipelined), copies each tile into a
    persistent full-size VMEM scratch while accumulating sum / sum-of-squares,
    then at the last grid step folds BN into (scale, shift) and runs the
    normalize + matmul loop entirely out of VMEM.
    """
    inv_n = 1.0 / float(n_true)

    def kernel(x_ref, gb_ref, w_ref, b_ref, o_ref, xs_ref, acc_ref):
        i = pl.program_id(0)

        @pl.when(i == 0)
        def _():
            acc_ref[...] = jnp.zeros_like(acc_ref)

        x = x_ref[...]                                        # (nt, S) f32
        xs_ref[i] = x                                         # keep VMEM copy
        acc_ref[0:1, :] += jnp.sum(x, axis=0, keepdims=True)
        acc_ref[1:2, :] += jnp.sum(x * x, axis=0, keepdims=True)

        @pl.when(i == num_tiles - 1)
        def _():
            mean = acc_ref[0:1, :] * inv_n
            # Clamp E[x^2]-mean^2 against f32 cancellation going negative.
            var = jnp.maximum(acc_ref[1:2, :] * inv_n - mean * mean, 0.0)
            scale = gb_ref[0:1, :] * jax.lax.rsqrt(var + eps)
            shift = gb_ref[1:2, :] - mean * scale

            def body(t, carry):
                y = (xs_ref[t] * scale + shift).astype(w_ref.dtype)
                o_ref[t] = (
                    jnp.dot(y, w_ref[...], preferred_element_type=jnp.float32)
                    + b_ref[...]
                ).astype(o_ref.dtype)
                return carry

            jax.lax.fori_loop(0, num_tiles, body, 0)

    return kernel


def _stats_partial_kernel(x_ref, ps_ref):
    """Tiled pass 1: per-core partial (sum, sum-of-squares) over its batch tiles.

    Grid = (cores, tiles_per_core); the core axis is 'parallel' so v7x's two
    TensorCores split the reduction.  The (2, S) output block is resident
    across the inner axis and acts as the accumulator (no scratch needed).
    """
    @pl.when(pl.program_id(1) == 0)
    def _():
        ps_ref[...] = jnp.zeros_like(ps_ref)

    x = x_ref[...]                                            # (nt, S) f32
    ps_ref[0:1, :] += jnp.sum(x, axis=0, keepdims=True)
    ps_ref[1:2, :] += jnp.sum(x * x, axis=0, keepdims=True)


def _folded_matmul_kernel(x_ref, w_ref, b_ref, o_ref):
    """Tiled pass 2: BN folded into W'/b' -> pure matmul + bias per batch tile."""
    y = x_ref[...].astype(w_ref.dtype)                        # cast at dot boundary
    o_ref[...] = (
        jnp.dot(y, w_ref[...], preferred_element_type=jnp.float32) + b_ref[...]
    ).astype(o_ref.dtype)


# ---------------------------------------------------------------------------
# Wrapper
# ---------------------------------------------------------------------------
def reglog_forward(x, gamma, beta, w, b, *, eps=EPS, n_tile=1024,
                   matmul_dtype=jnp.bfloat16, out_dtype=jnp.float32,
                   max_fused_bytes=None):
    """RegLog forward.

    x:     (N, S) features
    gamma: (S,)   BN weight     beta: (S,) BN bias
    w:     (L, S) Linear weight (PyTorch layout)   b: (L,) Linear bias
    """
    N, S = x.shape
    L = w.shape[0]
    Lp = _round_up(L, 128)                         # lane-dense output stores

    mm_itemsize = jnp.dtype(matmul_dtype).itemsize
    vmem_cap = _vmem_capacity_bytes()
    vmem_limit = int(vmem_cap * 0.75)              # headroom for compiler scratch
    if max_fused_bytes is None:
        max_fused_bytes = int(vmem_cap * 0.55)

    # Batch tile: multiple of 8 sublanes, capped at n_tile (default 1024 rows).
    nt = _round_up(min(n_tile, _round_up(N, 8)), 8)
    num_tiles = pl.cdiv(N, nt)

    # Host-side (XLA) layout plumbing.
    x_f32 = x.astype(jnp.float32)
    gamma_f = gamma.reshape(1, S).astype(jnp.float32)
    beta_f = beta.reshape(1, S).astype(jnp.float32)
    w_t = jnp.pad(w.T.astype(jnp.float32), ((0, 0), (0, Lp - L)))         # (S, Lp)
    b_p = jnp.pad(b.reshape(1, L).astype(jnp.float32), ((0, 0), (0, Lp - L)))

    # Conservative VMEM working-set estimate for the fused single-read path.
    fused_bytes = (
        num_tiles * nt * S * 4          # full-x VMEM scratch
        + 2 * nt * S * 4                # double-buffered x blocks
        + 2 * num_tiles * nt * Lp * 4   # resident output (conservative 2x)
        + 2 * S * Lp * mm_itemsize      # resident weights
        + 8 * S * 4 + 4 * Lp * 4        # gamma/beta, accumulators, bias
    )

    if fused_bytes <= max_fused_bytes:
        # ------- fused single-HBM-read path -------
        Np = num_tiles * nt
        # Zero-padded rows are exact: they add 0 to sum/sumsq while we divide by N.
        x_p = x_f32 if Np == N else jnp.pad(x_f32, ((0, Np - N), (0, 0)))
        gb = jnp.concatenate([gamma_f, beta_f], axis=0)                   # (2, S)
        w_mm = w_t.astype(matmul_dtype)

        out3 = pl.pallas_call(
            _make_fused_streaming_kernel(N, eps, num_tiles),
            out_shape=jax.ShapeDtypeStruct((num_tiles, nt, Lp), out_dtype),
            grid=(num_tiles,),
            in_specs=[
                pl.BlockSpec((nt, S), lambda i: (i, 0)),
                pl.BlockSpec((2, S), lambda i: (0, 0)),
                pl.BlockSpec((S, Lp), lambda i: (0, 0)),
                pl.BlockSpec((1, Lp), lambda i: (0, 0)),
            ],
            out_specs=pl.BlockSpec((num_tiles, nt, Lp), lambda i: (0, 0, 0)),
            scratch_shapes=[
                pltpu.VMEM((num_tiles, nt, S), jnp.float32),   # streamed copy of x
                pltpu.VMEM((2, S), jnp.float32),               # sum / sumsq
            ],
            compiler_params=pltpu.CompilerParams(
                dimension_semantics=("arbitrary",),
                vmem_limit_bytes=vmem_limit),
        )(x_p, gb, w_mm, b_p)
        out_p = out3.reshape(Np, Lp)

    else:
        # ------- two-pass tiled path (batch too large for VMEM) -------
        ncores = 2 if num_tiles >= 2 else 1
        tpc = pl.cdiv(num_tiles, ncores)            # tiles per core
        Np = ncores * tpc * nt
        x_p = x_f32 if Np == N else jnp.pad(x_f32, ((0, Np - N), (0, 0)))

        # Pass 1: partial (sum, sumsq) per core; core axis 'parallel' (v7x 2x TC).
        ps = pl.pallas_call(
            _stats_partial_kernel,
            out_shape=jax.ShapeDtypeStruct((ncores, 2, S), jnp.float32),
            grid=(ncores, tpc),
            in_specs=[
                pl.BlockSpec((nt, S), lambda c, i: (c * tpc + i, 0)),
            ],
            out_specs=pl.BlockSpec((None, 2, S), lambda c, i: (c, 0, 0)),
            compiler_params=pltpu.CompilerParams(
                dimension_semantics=("parallel", "arbitrary"),
                vmem_limit_bytes=vmem_limit),
        )(x_p)

        # Finalize stats and fold BN into the matmul operands (tiny XLA ops).
        inv_n = 1.0 / float(N)
        total = jnp.sum(ps, axis=0)                                       # (2, S)
        mean = total[0:1, :] * inv_n
        var = jnp.maximum(total[1:2, :] * inv_n - mean * mean, 0.0)
        scale = gamma_f * jax.lax.rsqrt(var + eps)                        # (1, S)
        shift = beta_f - mean * scale                                     # (1, S)
        w_fold = (scale.reshape(S, 1) * w_t).astype(matmul_dtype)         # (S, Lp)
        b_fold = shift @ w_t + b_p                                        # (1, Lp)

        # Pass 2: pure matmul + bias; batch tiles independent ('parallel').
        out_p = pl.pallas_call(
            _folded_matmul_kernel,
            out_shape=jax.ShapeDtypeStruct((Np, Lp), out_dtype),
            grid=(Np // nt,),
            in_specs=[
                pl.BlockSpec((nt, S), lambda i: (i, 0)),
                pl.BlockSpec((S, Lp), lambda i: (0, 0)),
                pl.BlockSpec((1, Lp), lambda i: (0, 0)),
            ],
            out_specs=pl.BlockSpec((nt, Lp), lambda i: (i, 0)),
            compiler_params=pltpu.CompilerParams(
                dimension_semantics=("parallel",),
                vmem_limit_bytes=vmem_limit),
        )(x_p, w_fold, b_fold)

    return out_p[:N, :L]


# ---------------------------------------------------------------------------
# Pure-JAX reference (mirrors PyTorch training-mode BN + Linear)
# ---------------------------------------------------------------------------
def reglog_reference(x, gamma, beta, w, b, eps=EPS):
    mean = jnp.mean(x, axis=0, keepdims=True)
    var = jnp.mean((x - mean) ** 2, axis=0, keepdims=True)
    y = (x - mean) * jax.lax.rsqrt(var + eps) * gamma.reshape(1, -1) + beta.reshape(1, -1)
    return y @ w.T + b.reshape(1, -1)


if __name__ == "__main__":
    # arch='r2plus1d_18_old' -> feature dim s=512; pick num_labels=16.
    S, L = 512, 16

    key = jax.random.PRNGKey(0)
    kx1, kx2, kw = jax.random.split(key, 3)

    # Deterministic parameter init mirroring RegLog.__init__:
    gamma = jnp.ones((S,), jnp.float32)                     # bn.weight.fill_(1)
    beta = jnp.zeros((S,), jnp.float32)                     # bn.bias.zero_()
    w = 0.01 * jax.random.normal(kw, (L, S), jnp.float32)   # linear.weight ~ N(0, .01)
    b = jnp.zeros((L,), jnp.float32)                        # linear.bias.zero_()

    # --- Case 1: tiny batch -> fused path, single tile ----------------------
    x1 = jax.random.normal(kx1, (8, S), jnp.float32)
    ref1 = reglog_reference(x1, gamma, beta, w, b)
    out1_f32 = jax.block_until_ready(
        reglog_forward(x1, gamma, beta, w, b, matmul_dtype=jnp.float32))
    out1_bf16 = jax.block_until_ready(
        reglog_forward(x1, gamma, beta, w, b, matmul_dtype=jnp.bfloat16))
    assert out1_f32.shape == (8, L)
    assert jnp.allclose(out1_f32, ref1, atol=2e-3, rtol=2e-3), "fused f32 mismatch"
    assert jnp.allclose(out1_bf16, ref1, atol=3e-2, rtol=3e-2), "fused bf16 mismatch"

    # --- Case 2: batch not divisible by the tile -> fused streaming path ----
    x2 = jax.random.normal(kx2, (300, S), jnp.float32)
    ref2 = reglog_reference(x2, gamma, beta, w, b)
    out2_f32 = jax.block_until_ready(
        reglog_forward(x2, gamma, beta, w, b, n_tile=128, matmul_dtype=jnp.float32))
    out2_bf16 = jax.block_until_ready(
        reglog_forward(x2, gamma, beta, w, b, n_tile=128, matmul_dtype=jnp.bfloat16))
    assert out2_f32.shape == (300, L)
    assert jnp.allclose(out2_f32, ref2, atol=2e-3, rtol=2e-3), "stream f32 mismatch"
    assert jnp.allclose(out2_bf16, ref2, atol=3e-2, rtol=3e-2), "stream bf16 mismatch"

    # --- Case 3: force the large-batch two-pass tiled path at small N -------
    out3_f32 = jax.block_until_ready(
        reglog_forward(x2, gamma, beta, w, b, n_tile=128,
                       matmul_dtype=jnp.float32, max_fused_bytes=0))
    out3_bf16 = jax.block_until_ready(
        reglog_forward(x2, gamma, beta, w, b, n_tile=128,
                       matmul_dtype=jnp.bfloat16, max_fused_bytes=0))
    assert out3_f32.shape == (300, L)
    assert jnp.allclose(out3_f32, ref2, atol=2e-3, rtol=2e-3), "tiled f32 mismatch"
    assert jnp.allclose(out3_bf16, ref2, atol=3e-2, rtol=3e-2), "tiled bf16 mismatch"

    print("KERNEL_OK")
</pallas_src>

<mosaic_0001>
module attributes {stable_mosaic.version = 11 : i64} {
  func.func @kernel(%arg0: i32, %arg1: memref<8x512xf32, #tpu.memory_space<vmem>>, %arg2: memref<2x512xf32, #tpu.memory_space<vmem>>, %arg3: memref<512x128xf32, #tpu.memory_space<vmem>>, %arg4: memref<1x128xf32, #tpu.memory_space<vmem>>, %arg5: memref<1x8x128xf32, #tpu.memory_space<vmem>>, %arg6: memref<1x8x512xf32, #tpu.memory_space<vmem>>, %arg7: memref<2x512xf32, #tpu.memory_space<vmem>>) attributes {dimension_semantics = [#tpu.dimension_semantics<arbitrary>], iteration_bounds = array<i64: 1>, scalar_prefetch = 0 : i64, scratch_operands = 2 : i64, tpu.core_type = #tpu.core_type<tc>, window_params = [{transform_indices = @transform_0, window_bounds = array<i64: 8, 512>}, {pipeline_mode = #tpu.pipeline_mode<synchronous>, transform_indices = @transform_1, window_bounds = array<i64: 2, 512>}, {pipeline_mode = #tpu.pipeline_mode<synchronous>, transform_indices = @transform_2, window_bounds = array<i64: 512, 128>}, {pipeline_mode = #tpu.pipeline_mode<synchronous>, transform_indices = @transform_3, window_bounds = array<i64: 1, 128>}, {pipeline_mode = #tpu.pipeline_mode<synchronous>, transform_indices = @transform_4, window_bounds = array<i64: 1, 8, 128>}]} {
    %c0_i32 = arith.constant 0 : i32
    %0 = arith.cmpi eq, %arg0, %c0_i32 : i32
    %1 = arith.extui %0 : i1 to i32
    %c0_i32_0 = arith.constant 0 : i32
    %2 = arith.cmpi ne, %1, %c0_i32_0 : i32
    scf.if %2 {
      %cst_14 = arith.constant 0.000000e+00 : f32
      %22 = vector.broadcast %cst_14 : f32 to vector<2x512xf32>
      %c0_15 = arith.constant 0 : index
      %c0_16 = arith.constant 0 : index
      %23 = vector.load %arg7[%c0_15, %c0_16] : memref<2x512xf32, #tpu.memory_space<vmem>>, vector<2x512xf32>
      tpu.vector_store %arg7[%c0_15, %c0_16], %22 {strides = array<i32>} : memref<2x512xf32, #tpu.memory_space<vmem>>, vector<2x512xf32>,
    } else {
    }
    %c0 = arith.constant 0 : index
    %c0_1 = arith.constant 0 : index
    %3 = vector.load %arg1[%c0, %c0_1] : memref<8x512xf32, #tpu.memory_space<vmem>>, vector<8x512xf32>
    %4 = arith.index_cast %arg0 : i32 to index
    %c0_2 = arith.constant 0 : index
    %c0_3 = arith.constant 0 : index
    %5 = vector.load %arg6[%4, %c0_2, %c0_3] : memref<1x8x512xf32, #tpu.memory_space<vmem>>, vector<1x8x512xf32>
    %6 = vector.shape_cast %5 : vector<1x8x512xf32> to vector<8x512xf32>
    %7 = vector.shape_cast %3 : vector<8x512xf32> to vector<1x8x512xf32>
    tpu.vector_store %arg6[%4, %c0_2, %c0_3], %7 {strides = array<i32>} : memref<1x8x512xf32, #tpu.memory_space<vmem>>, vector<1x8x512xf32>,
    %c0_4 = arith.constant 0 : index
    %c0_5 = arith.constant 0 : index
    %8 = vector.load %arg7[%c0_4, %c0_5] : memref<2x512xf32, #tpu.memory_space<vmem>>, vector<1x512xf32>
    %cst = arith.constant dense<0.000000e+00> : vector<512xf32>
    %9 = vector.multi_reduction <add>, %3, %cst [0] : vector<8x512xf32> to vector<512xf32>
    %10 = vector.shape_cast %9 : vector<512xf32> to vector<1x512xf32>
    %11 = arith.addf %8, %10 : vector<1x512xf32>
    %c0_6 = arith.constant 0 : index
    %c0_7 = arith.constant 0 : index
    %12 = vector.load %arg7[%c0_6, %c0_7] : memref<2x512xf32, #tpu.memory_space<vmem>>, vector<1x512xf32>
    tpu.vector_store %arg7[%c0_6, %c0_7], %11 {strides = array<i32>} : memref<2x512xf32, #tpu.memory_space<vmem>>, vector<1x512xf32>,
    %c1 = arith.constant 1 : index
    %c0_8 = arith.constant 0 : index
    %13 = vector.load %arg7[%c1, %c0_8] : memref<2x512xf32, #tpu.memory_space<vmem>>, vector<1x512xf32>
    %14 = arith.mulf %3, %3 : vector<8x512xf32>
    %cst_9 = arith.constant dense<0.000000e+00> : vector<512xf32>
    %15 = vector.multi_reduction <add>, %14, %cst_9 [0] : vector<8x512xf32> to vector<512xf32>
    %16 = vector.shape_cast %15 : vector<512xf32> to vector<1x512xf32>
    %17 = arith.addf %13, %16 : vector<1x512xf32>
    %c1_10 = arith.constant 1 : index
    %c0_11 = arith.constant 0 : index
    %18 = vector.load %arg7[%c1_10, %c0_11] : memref<2x512xf32, #tpu.memory_space<vmem>>, vector<1x512xf32>
    tpu.vector_store %arg7[%c1_10, %c0_11], %17 {strides = array<i32>} : memref<2x512xf32, #tpu.memory_space<vmem>>, vector<1x512xf32>,
    %c0_i32_12 = arith.constant 0 : i32
    %19 = arith.cmpi eq, %arg0, %c0_i32_12 : i32
    %20 = arith.extui %19 : i1 to i32
    %c0_i32_13 = arith.constant 0 : i32
    %21 = arith.cmpi ne, %20, %c0_i32_13 : i32
    scf.if %21 {
      %c0_14 = arith.constant 0 : index
      %c0_15 = arith.constant 0 : index
      %22 = vector.load %arg7[%c0_14, %c0_15] : memref<2x512xf32, #tpu.memory_space<vmem>>, vector<1x512xf32>
      %cst_16 = arith.constant 1.250000e-01 : f32
      %23 = vector.broadcast %cst_16 : f32 to vector<1x512xf32>
      %24 = arith.mulf %22, %23 : vector<1x512xf32>
      %c1_17 = arith.constant 1 : index
      %c0_18 = arith.constant 0 : index
      %25 = vector.load %arg7[%c1_17, %c0_18] : memref<2x512xf32, #tpu.memory_space<vmem>>, vector<1x512xf32>
      %cst_19 = arith.constant 1.250000e-01 : f32
      %26 = vector.broadcast %cst_19 : f32 to vector<1x512xf32>
      %27 = arith.mulf %25, %26 : vector<1x512xf32>
      %28 = arith.mulf %24, %24 : vector<1x512xf32>
      %29 = arith.subf %27, %28 : vector<1x512xf32>
      %cst_20 = arith.constant 0.000000e+00 : f32
      %30 = vector.broadcast %cst_20 : f32 to vector<1x512xf32>
      %31 = arith.maximumf %29, %30 : vector<1x512xf32>
      %c0_21 = arith.constant 0 : index
      %c0_22 = arith.constant 0 : index
      %32 = vector.load %arg2[%c0_21, %c0_22] : memref<2x512xf32, #tpu.memory_space<vmem>>, vector<1x512xf32>
      %cst_23 = arith.constant 9.99999974E-6 : f32
      %33 = vector.broadcast %cst_23 : f32 to vector<1x512xf32>
      %34 = arith.addf %31, %33 : vector<1x512xf32>
      %35 = math.rsqrt %34 : vector<1x512xf32>
      %36 = arith.mulf %32, %35 : vector<1x512xf32>
      %c1_24 = arith.constant 1 : index
      %c0_25 = arith.constant 0 : index
      %37 = vector.load %arg2[%c1_24, %c0_25] : memref<2x512xf32, #tpu.memory_space<vmem>>, vector<1x512xf32>
      %38 = arith.mulf %24, %36 : vector<1x512xf32>
      %39 = arith.subf %37, %38 : vector<1x512xf32>
      %c0_i32_26 = arith.constant 0 : i32
      %40 = arith.index_cast %c0_i32_26 : i32 to index
      %c0_27 = arith.constant 0 : index
      %c0_28 = arith.constant 0 : index
      %41 = vector.load %arg6[%40, %c0_27, %c0_28] : memref<1x8x512xf32, #tpu.memory_space<vmem>>, vector<1x8x512xf32>
      %42 = vector.shape_cast %41 : vector<1x8x512xf32> to vector<8x512xf32>
      %43 = vector.broadcast %36 : vector<1x512xf32> to vector<8x512xf32>
      %44 = arith.mulf %42, %43 : vector<8x512xf32>
      %45 = vector.broadcast %39 : vector<1x512xf32> to vector<8x512xf32>
      %46 = arith.addf %44, %45 : vector<8x512xf32>
      %c0_29 = arith.constant 0 : index
      %c0_30 = arith.constant 0 : index
      %47 = vector.load %arg3[%c0_29, %c0_30] : memref<512x128xf32, #tpu.memory_space<vmem>>, vector<512x128xf32>
      %cst_31 = arith.constant dense<0.000000e+00> : vector<8x128xf32>
      %48 = tpu.matmul %46, %47, %cst_31 {dimension_numbers = #tpu.dot_dimension_numbers<[1], [0], [0], [1], [0, 0, 1, 1], [], []>} : vector<8x512xf32>, vector<512x128xf32>, vector<8x128xf32> -> vector<8x128xf32>
      %c0_32 = arith.constant 0 : index
      %c0_33 = arith.constant 0 : index
      %49 = vector.load %arg4[%c0_32, %c0_33] : memref<1x128xf32, #tpu.memory_space<vmem>>, vector<1x128xf32>
      %50 = vector.broadcast %49 : vector<1x128xf32> to vector<8x128xf32>
      %51 = arith.addf %48, %50 : vector<8x128xf32>
      %52 = arith.index_cast %c0_i32_26 : i32 to index
      %c0_34 = arith.constant 0 : index
      %c0_35 = arith.constant 0 : index
      %53 = vector.load %arg5[%52, %c0_34, %c0_35] : memref<1x8x128xf32, #tpu.memory_space<vmem>>, vector<1x8x128xf32>
      %54 = vector.shape_cast %53 : vector<1x8x128xf32> to vector<8x128xf32>
      %55 = vector.shape_cast %51 : vector<8x128xf32> to vector<1x8x128xf32>
      tpu.vector_store %arg5[%52, %c0_34, %c0_35], %55 {strides = array<i32>} : memref<1x8x128xf32, #tpu.memory_space<vmem>>, vector<1x8x128xf32>,
      %c1_i32 = arith.constant 1 : i32
    } else {
    }
    return
  }
  func.func @transform_0(%arg0: i32) -> (i32, i32) {
    %c0_i32 = arith.constant 0 : i32
    %c0_i32_0 = arith.constant 0 : i32
    return %arg0, %c0_i32 : i32, i32
  }
  func.func @transform_1(%arg0: i32) -> (i32, i32) {
    %c0_i32 = arith.constant 0 : i32
    %c0_i32_0 = arith.constant 0 : i32
    %c0_i32_1 = arith.constant 0 : i32
    return %c0_i32, %c0_i32_0 : i32, i32
  }
  func.func @transform_2(%arg0: i32) -> (i32, i32) {
    %c0_i32 = arith.constant 0 : i32
    %c0_i32_0 = arith.constant 0 : i32
    %c0_i32_1 = arith.constant 0 : i32
    return %c0_i32, %c0_i32_0 : i32, i32
  }
  func.func @transform_3(%arg0: i32) -> (i32, i32) {
    %c0_i32 = arith.constant 0 : i32
    %c0_i32_0 = arith.constant 0 : i32
    %c0_i32_1 = arith.constant 0 : i32
    return %c0_i32, %c0_i32_0 : i32, i32
  }
  func.func @transform_4(%arg0: i32) -> (i32, i32, i32) {
    %c0_i32 = arith.constant 0 : i32
    %c0_i32_0 = arith.constant 0 : i32
    %c0_i32_1 = arith.constant 0 : i32
    %c0_i32_2 = arith.constant 0 : i32
    return %c0_i32, %c0_i32_0, %c0_i32_1 : i32, i32, i32
  }
}

</mosaic_0001>

<llo_original>
// kernel: tpu_custom_call.1
$region0: #{tpu_custom_call.1}
  #allocation0 [shape = 'u32[]', space=smem, size = 0x4, offset = 0x4, fixed_abs, tag = 'smem constant byte address 0x4 - core index']
  #allocation1 [shape = 'u32[144,128]{1,0:T(1,128)}', space=vmem, size = 0x12000, scoped, tag = 'internal scratch']
  #allocation2 [shape = 'f32[1,8,512]{2,1,0:T(8,128)}', space=vmem, size = 0x4000, scoped, tag = 'scratch operand']
  #allocation3 [shape = 'f32[2,512]{1,0:T(2,128)}', space=vmem, size = 0x1000, scoped, tag = 'scratch operand']
  %s0 = inlined_call_operand.hbm [shape: f32[8,512], index: 0, kind: input, shape index: {}]
  %s1 = inlined_call_operand.hbm [shape: f32[2,512], index: 1, kind: input, shape index: {}]
  %s2 = inlined_call_operand.hbm [shape: f32[512,128], index: 2, kind: input, shape index: {}]
  %s3 = inlined_call_operand.vmem [shape: f32[1,128], index: 3, kind: input, shape index: {}]
  %s4 = inlined_call_operand.hbm [shape: f32[1,8,128], index: 4, kind: output, shape index: {}]
  %s5 = sld [smem:[#allocation0]]
  $region46: #{tpu_custom_call.1} parent=0
    _
  %s7 = ssub.s32 1, %s5
  %s8 = scalar_select 0, %s7, %s5
  $region1: #{tpu_custom_call.1} parent=0
    #allocation4 [shape = 'u8[16384]{0}', space=vmem, size = 0x4000, scoped, tag = 'input window, operand 0, single buffered']
    #allocation5 [shape = 's32[1]{0}', space=sflag, size = 0x4, scoped, tag = 'scoped memory for tpu_custom_call.1']
    #allocation6 [shape = 's32[1]{0}', space=sflag, size = 0x4, scoped, tag = 'scoped memory for tpu_custom_call.1']
    #allocation7 [shape = 'u8[4096]{0}', space=vmem, size = 0x1000, scoped, tag = 'input window, operand 1, single buffered']
    #allocation8 [shape = 's32[1]{0}', space=sflag, size = 0x4, scoped, tag = 'scoped memory for tpu_custom_call.1']
    #allocation9 [shape = 'u8[262144]{0}', space=vmem, size = 0x40000, scoped, tag = 'input window, operand 2, single buffered']
    #allocation10 [shape = 'u8[4096]{0}', space=vmem, size = 0x1000, scoped, tag = 'output window, operand 0, single buffered']
    %9 = vsyncpa [#allocation5], 0
    %10 = vsyncpa [#allocation8], 0
    %11 = vsyncpa [#allocation6], 0
    // Predicated region
    $region2: #{tpu_custom_call.1} parent=1 // pred_check
      _
    $region3: #{tpu_custom_call.1} parent=1 // pred_check_branch
      %13 = sbr.rel (0) target = $region5
    $region4: #{tpu_custom_call.1} parent=1 // pred_region
      %s15 = ssub.s32 512, 512
      %16 = vsyncadd [#allocation5], %s15
      %s18 = sshll.u32 [#allocation4], 4
      %s19 = int_to_ptr.vmem [resolvable:$true] %s18
      %21 = dma.hbm_to_vmem [thread:$0]  %s0, 512, %s19, [#allocation5]
    $region5: #{tpu_custom_call.1} parent=1 // pred_fallthru
      _
    // Predicated region
    $region6: #{tpu_custom_call.1} parent=1 // pred_check
      _
    $region7: #{tpu_custom_call.1} parent=1 // pred_check_branch
      %23 = sbr.rel (0) target = $region9
    $region8: #{tpu_custom_call.1} parent=1 // pred_region
      %s25 = ssub.s32 128, 128
      %26 = vsyncadd [#allocation8], %s25
      %s28 = sshll.u32 [#allocation7], 4
      %s29 = int_to_ptr.vmem [resolvable:$true] %s28
      %31 = dma.hbm_to_vmem [thread:$0]  %s1, 128, %s29, [#allocation8]
    $region9: #{tpu_custom_call.1} parent=1 // pred_fallthru
      _
    // Predicated region
    $region10: #{tpu_custom_call.1} parent=1 // pred_check
      _
    $region11: #{tpu_custom_call.1} parent=1 // pred_check_branch
      %33 = sbr.rel (0) target = $region13
    $region12: #{tpu_custom_call.1} parent=1 // pred_region
      %s35 = ssub.s32 8192, 8192
      %36 = vsyncadd [#allocation8], %s35
      %s37 = sshll.u32 [#allocation9], 4
      %s38 = int_to_ptr.vmem [resolvable:$true] %s37
      %43 = dma.hbm_to_vmem [thread:$0]  %s2, 8192, %s38, [#allocation8], 128, 128, 8
    $region13: #{tpu_custom_call.1} parent=1 // pred_fallthru
      _
    // Predicated region
    $region14: #{tpu_custom_call.1} parent=1 // pred_check
      _
    $region15: #{tpu_custom_call.1} parent=1 // pred_check_branch
      %45 = sbr.rel (0) target = $region17
    $region16: #{tpu_custom_call.1} parent=1 // pred_region
      _
    $region17: #{tpu_custom_call.1} parent=1 // pred_fallthru
      _
    // Predicated region
    $region18: #{tpu_custom_call.1} parent=1 // pred_check
      _
    $region19: #{tpu_custom_call.1} parent=1 // pred_check_branch
      %47 = sbr.rel (0) target = $region21
    $region20: #{tpu_custom_call.1} parent=1 // pred_region
      %48 = dma.done [#allocation5], 512
    $region21: #{tpu_custom_call.1} parent=1 // pred_fallthru
      _
    // Predicated region
    $region22: #{tpu_custom_call.1} parent=1 // pred_check
      _
    $region23: #{tpu_custom_call.1} parent=1 // pred_check_branch
      %50 = sbr.rel (0) target = $region25
    $region24: #{tpu_custom_call.1} parent=1 // pred_region
      %51 = dma.done [#allocation8], 128
    $region25: #{tpu_custom_call.1} parent=1 // pred_fallthru
      _
    // Predicated region
    $region26: #{tpu_custom_call.1} parent=1 // pred_check
      _
    $region27: #{tpu_custom_call.1} parent=1 // pred_check_branch
      %53 = sbr.rel (0) target = $region29
    $region28: #{tpu_custom_call.1} parent=1 // pred_region
      %54 = dma.done [#allocation8], 8192
    $region29: #{tpu_custom_call.1} parent=1 // pred_fallthru
      _
    %p55 = scmp.eq.s32.totalorder 0, 0
    // Predicated region
    $region30: #{tpu_custom_call.1} parent=1 // pred_check
      %p56 = pneg %p55
    $region31: #{tpu_custom_call.1} parent=1 // pred_check_branch
      %58 = sbr.rel (%p56) target = $region33
    $region32: #{tpu_custom_call.1} parent=1 // pred_region
      %59 = vst [vmem:[#allocation3] sm:$0xff] 0.0
    $region33: #{tpu_custom_call.1} parent=1 // pred_fallthru
      _
    %v60 = vld [vmem:[#allocation4] sm:$0xff]
    %v61 = vld [vmem:[#allocation4 + $0x8] sm:$0xff]
    %v62 = vld [vmem:[#allocation4 + $0x10] sm:$0xff]
    %v63 = vld [vmem:[#allocation4 + $0x18] sm:$0xff]
    %s64 = smul.u32 0, 4
    %s65 = smul.addr %s64, 8
    %s66 = scalar_lea.vmem [#allocation2], %s65
    %67 = vst [vmem:[%s66] sm:$0xff] %v60
    %68 = vst [vmem:[%s66 + $0x8] sm:$0xff] %v61
    %69 = vst [vmem:[%s66 + $0x10] sm:$0xff] %v62
    %70 = vst [vmem:[%s66 + $0x18] sm:$0xff] %v63
    %v71 = vld [vmem:[#allocation3] ss:$2 sm:$0xf]
    %v72 = vrot.slane %v60, 4
    %v73 = vadd.f32 %v60, %v72
    %v74 = vrot.slane %v73, 2
    %v75 = vadd.f32 %v73, %v74
    %v76 = vrot.slane %v75, 1
    %v77 = vadd.f32 %v75, %v76
    %v78 = vrot.slane %v61, 4
    %v79 = vadd.f32 %v61, %v78
    %v80 = vrot.slane %v79, 2
    %v81 = vadd.f32 %v79, %v80
    %v82 = vrot.slane %v81, 1
    %v83 = vadd.f32 %v81, %v82
    %v84 = vrot.slane %v62, 4
    %v85 = vadd.f32 %v62, %v84
    %v86 = vrot.slane %v85, 2
    %v87 = vadd.f32 %v85, %v86
    %v88 = vrot.slane %v87, 1
    %v89 = vadd.f32 %v87, %v88
    %v90 = vrot.slane %v63, 4
    %v91 = vadd.f32 %v63, %v90
    %v92 = vrot.slane %v91, 2
    %v93 = vadd.f32 %v91, %v92
    %v94 = vrot.slane %v93, 1
    %v95 = vadd.f32 %v93, %v94
    %v100 = vcombine.low %v77, %v83
    %v101 = vcombine.low %v89, %v95
    %v103 = vunpack.c.l.s4 1966171168
    %v104 = vunpack.c.0.s8 %v103
    %v105 = vlaneseq
    %v106 = vshrl.u32 %v105, 7
    %v107 = vsub.s32 %v104, %v106
    %v108 = vrot.slane %v100, %v107
    %v110 = vunpack.c.l.s4 1966171168
    %v111 = vunpack.c.0.s8 %v110
    %v112 = vlaneseq
    %v113 = vshrl.u32 %v112, 7
    %v114 = vsub.s32 %v111, %v113
    %v115 = vrot.slane %v101, %v114
    %v116 = vcombine.low %v108, %v115
    %v118 = vunpack.c.l.s4 1966171168
    %v119 = vunpack.c.0.s8 %v118
    %v120 = vlaneseq
    %v121 = vshrl.u32 %v120, 7
    %v122 = vsub.s32 %v119, %v121
    %v123 = vrot.slane %v116, %v122
    %v125 = vadd.f32 %v71, %v123
    %v126 = vlaneseq
    %vm127 = vcmp.ge.s32.totalorder %v126, 0
    %vm128 = vcmp.lt.s32.totalorder %v126, 512
    %vm129 = vmand %vm127, %vm128
    %130 = vst.msk [vmem:[#allocation3] ss:$2 sm:$0xf] %vm129, %v125
    %s131 = scalar_lea.vmem [#allocation3], 1
    %v132 = vld [vmem:[%s131] ss:$2 sm:$0xf]
    %v133 = vmul.f32 %v60, %v60
    %v134 = vmul.f32 %v61, %v61
    %v135 = vmul.f32 %v62, %v62
    %v136 = vmul.f32 %v63, %v63
    %v137 = vrot.slane %v133, 4
    %v138 = vadd.f32 %v133, %v137
    %v139 = vrot.slane %v138, 2
    %v140 = vadd.f32 %v138, %v139
    %v141 = vrot.slane %v140, 1
    %v142 = vadd.f32 %v140, %v141
    %v143 = vrot.slane %v134, 4
    %v144 = vadd.f32 %v134, %v143
    %v145 = vrot.slane %v144, 2
    %v146 = vadd.f32 %v144, %v145
    %v147 = vrot.slane %v146, 1
    %v148 = vadd.f32 %v146, %v147
    %v149 = vrot.slane %v135, 4
    %v150 = vadd.f32 %v135, %v149
    %v151 = vrot.slane %v150, 2
    %v152 = vadd.f32 %v150, %v151
    %v153 = vrot.slane %v152, 1
    %v154 = vadd.f32 %v152, %v153
    %v155 = vrot.slane %v136, 4
    %v156 = vadd.f32 %v136, %v155
    %v157 = vrot.slane %v156, 2
    %v158 = vadd.f32 %v156, %v157
    %v159 = vrot.slane %v158, 1
    %v160 = vadd.f32 %v158, %v159
    %v165 = vcombine.low %v142, %v148
    %v166 = vcombine.low %v154, %v160
    %v168 = vunpack.c.l.s4 1966171168
    %v169 = vunpack.c.0.s8 %v168
    %v170 = vlaneseq
    %v171 = vshrl.u32 %v170, 7
    %v172 = vsub.s32 %v169, %v171
    %v173 = vrot.slane %v165, %v172
    %v175 = vunpack.c.l.s4 1966171168
    %v176 = vunpack.c.0.s8 %v175
    %v177 = vlaneseq
    %v178 = vshrl.u32 %v177, 7
    %v179 = vsub.s32 %v176, %v178
    %v180 = vrot.slane %v166, %v179
    %v181 = vcombine.low %v173, %v180
    %v183 = vunpack.c.l.s4 1966171168
    %v184 = vunpack.c.0.s8 %v183
    %v185 = vlaneseq
    %v186 = vshrl.u32 %v185, 7
    %v187 = vsub.s32 %v184, %v186
    %v188 = vrot.slane %v181, %v187
    %v190 = vadd.f32 %v132, %v188
    %191 = vst.msk [vmem:[%s131] ss:$2 sm:$0xf] %vm129, %v190
    // Predicated region
    $region34: #{tpu_custom_call.1} parent=1 // pred_check
      %p192 = pneg %p55
    $region35: #{tpu_custom_call.1} parent=1 // pred_check_branch
      %194 = sbr.rel (%p192) target = $region37
    $region36: #{tpu_custom_call.1} parent=1 // pred_region
      %v195 = vld [vmem:[#allocation3] ss:$2 sm:$0xf]
      %v196 = vmul.f32 %v195, 0.125
      %v197 = vld [vmem:[%s131] ss:$2 sm:$0xf]
      %v198 = vmul.f32 %v197, 0.125
      %v199 = vmul.f32 %v196, %v196
      %v200 = vsub.f32 %v198, %v199
      %v201 = vmax.f32 %v200, 0.0
      %v202 = vld [vmem:[#allocation7] ss:$2 sm:$0xf]
      %v203 = vadd.f32 %v201, 1e-05
      %v204 = vrsqrt.pop %v203
      %v205 = vmul.f32 %v202, %v204
      %s206 = scalar_lea.vmem [#allocation7], 1
      %v207 = vld [vmem:[%s206] ss:$2 sm:$0xf]
      %v208 = vmul.f32 %v196, %v205
      %v209 = vsub.f32 %v207, %v208
      %v210 = vld [vmem:[#allocation2] sm:$0xff]
      %v211 = vld [vmem:[#allocation2 + $0x8] sm:$0xff]
      %v212 = vld [vmem:[#allocation2 + $0x10] sm:$0xff]
      %v213 = vld [vmem:[#allocation2 + $0x18] sm:$0xff]
      %v215 = vlaneseq
      %v216 = vshrl.u32 %v215, 7
      %v217 = vsub.s32 0, %v216
      %v218 = vrot.slane %v205, %v217
      %v219 = vlaneseq
      %v220 = vshrl.u32 %v219, 7
      %v221 = vsub.s32 1, %v220
      %v222 = vrot.slane %v205, %v221
      %v223 = vlaneseq
      %v224 = vshrl.u32 %v223, 7
      %v225 = vsub.s32 2, %v224
      %v226 = vrot.slane %v205, %v225
      %v227 = vlaneseq
      %v228 = vshrl.u32 %v227, 7
      %v229 = vsub.s32 3, %v228
      %v230 = vrot.slane %v205, %v229
      %v235 = vmul.f32 %v210, %v218
      %v236 = vmul.f32 %v211, %v222
      %v237 = vmul.f32 %v212, %v226
      %v238 = vmul.f32 %v213, %v230
      %v240 = vlaneseq
      %v241 = vshrl.u32 %v240, 7
      %v242 = vsub.s32 0, %v241
      %v243 = vrot.slane %v209, %v242
      %v244 = vlaneseq
      %v245 = vshrl.u32 %v244, 7
      %v246 = vsub.s32 1, %v245
      %v247 = vrot.slane %v209, %v246
      %v248 = vlaneseq
      %v249 = vshrl.u32 %v248, 7
      %v250 = vsub.s32 2, %v249
      %v251 = vrot.slane %v209, %v250
      %v252 = vlaneseq
      %v253 = vshrl.u32 %v252, 7
      %v254 = vsub.s32 3, %v253
      %v255 = vrot.slane %v209, %v254
      %v260 = vadd.f32 %v235, %v243
      %v261 = vadd.f32 %v236, %v247
      %v262 = vadd.f32 %v237, %v251
      %v263 = vadd.f32 %v238, %v255
      %v264 = vld [vmem:[#allocation9] sm:$0xff]
      %v265 = vld [vmem:[#allocation9 + $0x8] sm:$0xff]
      %v266 = vld [vmem:[#allocation9 + $0x10] sm:$0xff]
      %v267 = vld [vmem:[#allocation9 + $0x18] sm:$0xff]
      %v268 = vld [vmem:[#allocation9 + $0x20] sm:$0xff]
      %v269 = vld [vmem:[#allocation9 + $0x28] sm:$0xff]
      %v270 = vld [vmem:[#allocation9 + $0x30] sm:$0xff]
      %v271 = vld [vmem:[#allocation9 + $0x38] sm:$0xff]
      %v272 = vld [vmem:[#allocation9 + $0x40] sm:$0xff]
      %v273 = vld [vmem:[#allocation9 + $0x48] sm:$0xff]
      %v274 = vld [vmem:[#allocation9 + $0x50] sm:$0xff]
      %v275 = vld [vmem:[#allocation9 + $0x58] sm:$0xff]
      %v276 = vld [vmem:[#allocation9 + $0x60] sm:$0xff]
      %v277 = vld [vmem:[#allocation9 + $0x68] sm:$0xff]
      %v278 = vld [vmem:[#allocation9 + $0x70] sm:$0xff]
      %v279 = vld [vmem:[#allocation9 + $0x78] sm:$0xff]
      %v280 = vld [vmem:[#allocation9 + $0x80] sm:$0xff]
      %v281 = vld [vmem:[#allocation9 + $0x88] sm:$0xff]
      %v282 = vld [vmem:[#allocation9 + $0x90] sm:$0xff]
      %v283 = vld [vmem:[#allocation9 + $0x98] sm:$0xff]
      %v284 = vld [vmem:[#allocation9 + $0xa0] sm:$0xff]
      %v285 = vld [vmem:[#allocation9 + $0xa8] sm:$0xff]
      %v286 = vld [vmem:[#allocation9 + $0xb0] sm:$0xff]
      %v287 = vld [vmem:[#allocation9 + $0xb8] sm:$0xff]
      %v288 = vld [vmem:[#allocation9 + $0xc0] sm:$0xff]
      %v289 = vld [vmem:[#allocation9 + $0xc8] sm:$0xff]
      %v290 = vld [vmem:[#allocation9 + $0xd0] sm:$0xff]
      %v291 = vld [vmem:[#allocation9 + $0xd8] sm:$0xff]
      %v292 = vld [vmem:[#allocation9 + $0xe0] sm:$0xff]
      %v293 = vld [vmem:[#allocation9 + $0xe8] sm:$0xff]
      %v294 = vld [vmem:[#allocation9 + $0xf0] sm:$0xff]
      %v295 = vld [vmem:[#allocation9 + $0xf8] sm:$0xff]
      %v296 = vld [vmem:[#allocation9 + $0x100] sm:$0xff]
      %v297 = vld [vmem:[#allocation9 + $0x108] sm:$0xff]
      %v298 = vld [vmem:[#allocation9 + $0x110] sm:$0xff]
      %v299 = vld [vmem:[#allocation9 + $0x118] sm:$0xff]
      %v300 = vld [vmem:[#allocation9 + $0x120] sm:$0xff]
      %v301 = vld [vmem:[#allocation9 + $0x128] sm:$0xff]
      %v302 = vld [vmem:[#allocation9 + $0x130] sm:$0xff]
      %v303 = vld [vmem:[#allocation9 + $0x138] sm:$0xff]
      %v304 = vld [vmem:[#allocation9 + $0x140] sm:$0xff]
      %v305 = vld [vmem:[#allocation9 + $0x148] sm:$0xff]
      %v306 = vld [vmem:[#allocation9 + $0x150] sm:$0xff]
      %v307 = vld [vmem:[#allocation9 + $0x158] sm:$0xff]
      %v308 = vld [vmem:[#allocation9 + $0x160] sm:$0xff]
      %v309 = vld [vmem:[#allocation9 + $0x168] sm:$0xff]
      %v310 = vld [vmem:[#allocation9 + $0x170] sm:$0xff]
      %v311 = vld [vmem:[#allocation9 + $0x178] sm:$0xff]
      %v312 = vld [vmem:[#allocation9 + $0x180] sm:$0xff]
      %v313 = vld [vmem:[#allocation9 + $0x188] sm:$0xff]
      %v314 = vld [vmem:[#allocation9 + $0x190] sm:$0xff]
      %v315 = vld [vmem:[#allocation9 + $0x198] sm:$0xff]
      %v316 = vld [vmem:[#allocation9 + $0x1a0] sm:$0xff]
      %v317 = vld [vmem:[#allocation9 + $0x1a8] sm:$0xff]
      %v318 = vld [vmem:[#allocation9 + $0x1b0] sm:$0xff]
      %v319 = vld [vmem:[#allocation9 + $0x1b8] sm:$0xff]
      %v320 = vld [vmem:[#allocation9 + $0x1c0] sm:$0xff]
      %v321 = vld [vmem:[#allocation9 + $0x1c8] sm:$0xff]
      %v322 = vld [vmem:[#allocation9 + $0x1d0] sm:$0xff]
      %v323 = vld [vmem:[#allocation9 + $0x1d8] sm:$0xff]
      %v324 = vld [vmem:[#allocation9 + $0x1e0] sm:$0xff]
      %v325 = vld [vmem:[#allocation9 + $0x1e8] sm:$0xff]
      %v326 = vld [vmem:[#allocation9 + $0x1f0] sm:$0xff]
      %v327 = vld [vmem:[#allocation9 + $0x1f8] sm:$0xff]
      %v328 = vld [vmem:[%s3] sm:$0x1]
      %v330 = vlaneseq
      %v331 = vshrl.u32 %v330, 7
      %v332 = vsub.s32 0, %v331
      %v333 = vrot.slane %v328, %v332
      %335 = vmatprep.subr.mxu0 0.0
      %336 = vmatpush1.msra.mxu0 %v264
      %337 = vmatprep.subr.mxu0 0.0
      %338 = vmatpush1.msra.mxu0 %v265
      %339 = vmatprep.subr.mxu0 0.0
      %340 = vmatpush1.msra.mxu0 %v266
      %341 = vmatprep.subr.mxu0 0.0
      %342 = vmatpush1.msra.mxu0 %v267
      %343 = vmatprep.subr.mxu0 0.0
      %344 = vmatpush1.msra.mxu0 %v268
      %345 = vmatprep.subr.mxu0 0.0
      %346 = vmatpush1.msra.mxu0 %v269
      %347 = vmatprep.subr.mxu0 0.0
      %348 = vmatpush1.msra.mxu0 %v270
      %349 = vmatprep.subr.mxu0 0.0
      %350 = vmatpush1.msra.mxu0 %v271
      %351 = vmatprep.subr.mxu0 0.0
      %352 = vmatpush1.msra.mxu0 %v272
      %353 = vmatprep.subr.mxu0 0.0
      %354 = vmatpush1.msra.mxu0 %v273
      %355 = vmatprep.subr.mxu0 0.0
      %356 = vmatpush1.msra.mxu0 %v274
      %357 = vmatprep.subr.mxu0 0.0
      %358 = vmatpush1.msra.mxu0 %v275
      %359 = vmatprep.subr.mxu0 0.0
      %360 = vmatpush1.msra.mxu0 %v276
      %361 = vmatprep.subr.mxu0 0.0
      %362 = vmatpush1.msra.mxu0 %v277
      %363 = vmatprep.subr.mxu0 0.0
      %364 = vmatpush1.msra.mxu0 %v278
      %365 = vmatprep.subr.mxu0 0.0
      %366 = vmatpush1.msra.mxu0 %v279
      %367 = vmatprep.subr.mxu0 0.0
      %368 = vmatpush1.msra.mxu0 %v280
      %369 = vmatprep.subr.mxu0 0.0
      %370 = vmatpush1.msra.mxu0 %v281
      %371 = vmatprep.subr.mxu0 0.0
      %372 = vmatpush1.msra.mxu0 %v282
      %373 = vmatprep.subr.mxu0 0.0
      %374 = vmatpush1.msra.mxu0 %v283
      %375 = vmatprep.subr.mxu0 0.0
      %376 = vmatpush1.msra.mxu0 %v284
      %377 = vmatprep.subr.mxu0 0.0
      %378 = vmatpush1.msra.mxu0 %v285
      %379 = vmatprep.subr.mxu0 0.0
      %380 = vmatpush1.msra.mxu0 %v286
      %381 = vmatprep.subr.mxu0 0.0
      %382 = vmatpush1.msra.mxu0 %v287
      %383 = vmatprep.subr.mxu0 0.0
      %384 = vmatpush1.msra.mxu0 %v288
      %385 = vmatprep.subr.mxu0 0.0
      %386 = vmatpush1.msra.mxu0 %v289
      %387 = vmatprep.subr.mxu0 0.0
      %388 = vmatpush1.msra.mxu0 %v290
      %389 = vmatprep.subr.mxu0 0.0
      %390 = vmatpush1.msra.mxu0 %v291
      %391 = vmatprep.subr.mxu0 0.0
      %392 = vmatpush1.msra.mxu0 %v292
      %393 = vmatprep.subr.mxu0 0.0
      %394 = vmatpush1.msra.mxu0 %v293
      %395 = vmatprep.subr.mxu0 0.0
      %396 = vmatpush1.msra.mxu0 %v294
      %397 = vmatprep.subr.mxu0 0.0
      %398 = vmatpush1.msra.mxu0 %v295
      %399 = vmatprep.mubr.f32.mxu0 %v261
      %400 = vmatmul.mubr.f32.gmra.mrb[0].mxu0 %v260
      %v401 = vpop.f32.mrb[0].mxu0
      %v402 = vadd.f32 %v333, %v401
      %v403 = vpop.f32.mrb[0].mxu0
      %404 = vdwg.mxu0
      %405 = vmatprep.subr.mxu0 0.0
      %406 = vmatpush1.msra.mxu0 %v296
      %407 = vmatprep.subr.mxu0 0.0
      %408 = vmatpush1.msra.mxu0 %v297
      %409 = vmatprep.subr.mxu0 0.0
      %410 = vmatpush1.msra.mxu0 %v298
      %411 = vmatprep.subr.mxu0 0.0
      %412 = vmatpush1.msra.mxu0 %v299
      %413 = vmatprep.subr.mxu0 0.0
      %414 = vmatpush1.msra.mxu0 %v300
      %415 = vmatprep.subr.mxu0 0.0
      %416 = vmatpush1.msra.mxu0 %v301
      %417 = vmatprep.subr.mxu0 0.0
      %418 = vmatpush1.msra.mxu0 %v302
      %419 = vmatprep.subr.mxu0 0.0
      %420 = vmatpush1.msra.mxu0 %v303
      %421 = vmatprep.subr.mxu0 0.0
      %422 = vmatpush1.msra.mxu0 %v304
      %423 = vmatprep.subr.mxu0 0.0
      %424 = vmatpush1.msra.mxu0 %v305
      %425 = vmatprep.subr.mxu0 0.0
      %426 = vmatpush1.msra.mxu0 %v306
      %427 = vmatprep.subr.mxu0 0.0
      %428 = vmatpush1.msra.mxu0 %v307
      %429 = vmatprep.subr.mxu0 0.0
      %430 = vmatpush1.msra.mxu0 %v308
      %431 = vmatprep.subr.mxu0 0.0
      %432 = vmatpush1.msra.mxu0 %v309
      %433 = vmatprep.subr.mxu0 0.0
      %434 = vmatpush1.msra.mxu0 %v310
      %435 = vmatprep.subr.mxu0 0.0
      %436 = vmatpush1.msra.mxu0 %v311
      %437 = vmatprep.subr.mxu0 0.0
      %438 = vmatpush1.msra.mxu0 %v312
      %439 = vmatprep.subr.mxu0 0.0
      %440 = vmatpush1.msra.mxu0 %v313
      %441 = vmatprep.subr.mxu0 0.0
      %442 = vmatpush1.msra.mxu0 %v314
      %443 = vmatprep.subr.mxu0 0.0
      %444 = vmatpush1.msra.mxu0 %v315
      %445 = vmatprep.subr.mxu0 0.0
      %446 = vmatpush1.msra.mxu0 %v316
      %447 = vmatprep.subr.mxu0 0.0
      %448 = vmatpush1.msra.mxu0 %v317
      %449 = vmatprep.subr.mxu0 0.0
      %450 = vmatpush1.msra.mxu0 %v318
      %451 = vmatprep.subr.mxu0 0.0
      %452 = vmatpush1.msra.mxu0 %v319
      %453 = vmatprep.subr.mxu0 0.0
      %454 = vmatpush1.msra.mxu0 %v320
      %455 = vmatprep.subr.mxu0 0.0
      %456 = vmatpush1.msra.mxu0 %v321
      %457 = vmatprep.subr.mxu0 0.0
      %458 = vmatpush1.msra.mxu0 %v322
      %459 = vmatprep.subr.mxu0 0.0
      %460 = vmatpush1.msra.mxu0 %v323
      %461 = vmatprep.subr.mxu0 0.0
      %462 = vmatpush1.msra.mxu0 %v324
      %463 = vmatprep.subr.mxu0 0.0
      %464 = vmatpush1.msra.mxu0 %v325
      %465 = vmatprep.subr.mxu0 0.0
      %466 = vmatpush1.msra.mxu0 %v326
      %467 = vmatprep.subr.mxu0 0.0
      %468 = vmatpush1.msra.mxu0 %v327
      %469 = vmatprep.mubr.f32.mxu0 %v263
      %470 = vmatmul.mubr.f32.gmra.mrb[0].mxu0 %v262
      %v471 = vpop.f32.mrb[0].mxu0
      %v472 = vadd.f32 %v402, %v471
      %v473 = vpop.f32.mrb[0].mxu0
      %474 = vdwg.mxu0
      %475 = vst [vmem:[#allocation10] sm:$0xff] %v472
    $region37: #{tpu_custom_call.1} parent=1 // pred_fallthru
      _
    // Predicated region
    $region38: #{tpu_custom_call.1} parent=1 // pred_check
      _
    $region39: #{tpu_custom_call.1} parent=1 // pred_check_branch
      %477 = sbr.rel (0) target = $region41
    $region40: #{tpu_custom_call.1} parent=1 // pred_region
      %s479 = ssub.s32 128, 128
      %480 = vsyncadd [#allocation6], %s479
      %s482 = sshll.u32 [#allocation10], 4
      %s483 = int_to_ptr.vmem [resolvable:$true] %s482
      %485 = dma.vmem_to_hbm [thread:$0]  %s483, 128, %s4, [#allocation6]
    $region41: #{tpu_custom_call.1} parent=1 // pred_fallthru
      _
    // Predicated region
    $region42: #{tpu_custom_call.1} parent=1 // pred_check
      _
    $region43: #{tpu_custom_call.1} parent=1 // pred_check_branch
      %487 = sbr.rel (0) target = $region45
    $region44: #{tpu_custom_call.1} parent=1 // pred_region
      %488 = dma.done [#allocation6], 128
    $region45: #{tpu_custom_call.1} parent=1 // pred_fallthru
      _
    %489 = vsyncpa [#allocation5], 1
    %490 = vsyncpa [#allocation8], 1
    %491 = vsyncpa [#allocation6], 1

</llo_original>
